<compile_context>
chip_gen: v5e
topology: v5e:2x2
jax: 0.10.0
libtpu: 0.0.40
codegen_flags: <defaults>
</compile_context>

<pallas_src>
import functools

import jax
import jax.numpy as jnp
from jax import lax
from jax.experimental import pallas as pl
from jax.experimental.pallas import tpu as pltpu


def _maxlinear_kernel(x_ref, w_ref, out_ref, acc_ref, *, num_units):
    """One (batch-tile, k-tile) grid step: accumulate X@W^T, max at last k."""
    k = pl.program_id(1)

    @pl.when(k == 0)
    def _():
        acc_ref[...] = jnp.zeros_like(acc_ref)

    acc_ref[...] += jnp.dot(x_ref[...], w_ref[...],
                            preferred_element_type=jnp.float32)

    @pl.when(k == pl.num_programs(1) - 1)
    def _():
        acc = acc_ref[...]                                   # [TB, Np]
        col = lax.broadcasted_iota(jnp.int32, acc.shape, 1)  # lane index
        masked = jnp.where(col < num_units, acc, -jnp.inf)   # kill padded units
        out_ref[...] = jnp.max(masked, axis=-1, keepdims=True).astype(out_ref.dtype)


def maxlinear_forward(x, w, *, tb=None, tk=512):
    """x: [B, D] float32, w: [num_units, D] (torch fc1.weight) -> [B] float32."""
    B, D = x.shape
    N = w.shape[0]

    if tb is None:
        # Grow the MXU M dimension with batch (up to 256) for better utilization.
        tb = min(256, pl.cdiv(B, 8) * 8)

    Bp = pl.cdiv(B, tb) * tb
    Dp = pl.cdiv(D, tk) * tk
    Np = pl.cdiv(N, 128) * 128   # lane-dense unit axis

    x_p = jnp.pad(x.astype(jnp.float32), ((0, Bp - B), (0, Dp - D)))
    w_p = jnp.pad(w.astype(jnp.float32).T, ((0, Dp - D), (0, Np - N)))  # [Dp, Np]

    kernel = functools.partial(_maxlinear_kernel, num_units=N)
    out = pl.pallas_call(
        kernel,
        out_shape=jax.ShapeDtypeStruct((Bp, 1), jnp.float32),
        grid_spec=pltpu.PrefetchScalarGridSpec(
            num_scalar_prefetch=0,
            grid=(Bp // tb, Dp // tk),
            in_specs=[
                pl.BlockSpec((tb, tk), lambda i, k: (i, k)),   # X tile
                pl.BlockSpec((tk, Np), lambda i, k: (k, 0)),   # W^T tile
            ],
            out_specs=pl.BlockSpec((tb, 1), lambda i, k: (i, 0)),
            scratch_shapes=[pltpu.VMEM((tb, Np), jnp.float32)],
        ),
        compiler_params=pltpu.CompilerParams(
            dimension_semantics=("parallel", "arbitrary")),
    )(x_p, w_p)

    return out[:B, 0]


def reference_forward(x, w):
    """Pure-JAX reference with identical semantics (torch: max(fc1(X), dim=1)[0])."""
    return jnp.max(x @ w.T, axis=1)


if __name__ == "__main__":
    B, D, N = 16, 2048, 20   # batch, input_dim (small stand-in for 24300), num_units

    key = jax.random.PRNGKey(0)
    k_x, k_w = jax.random.split(key, 2)
    x = jax.random.normal(k_x, (B, D), jnp.float32)
    # Mirror nn.Linear default init range (uniform in +-1/sqrt(fan_in)).
    lim = 1.0 / jnp.sqrt(jnp.float32(D))
    w = jax.random.uniform(k_w, (N, D), jnp.float32, minval=-lim, maxval=lim)

    out = maxlinear_forward(x, w)
    out = jax.block_until_ready(out)

    ref = reference_forward(x, w)
    assert out.shape == (B,), out.shape
    assert jnp.allclose(out, ref, rtol=1e-4, atol=1e-4), (out, ref)

    print("KERNEL_OK")
</pallas_src>

<mosaic_0001>
module attributes {stable_mosaic.version = 11 : i64} {
  func.func @_maxlinear_kernel(%arg0: i32, %arg1: i32, %arg2: memref<16x512xf32, #tpu.memory_space<vmem>>, %arg3: memref<512x128xf32, #tpu.memory_space<vmem>>, %arg4: memref<16x1xf32, #tpu.memory_space<vmem>>, %arg5: memref<16x128xf32, #tpu.memory_space<vmem>>) attributes {dimension_semantics = [#tpu.dimension_semantics<parallel>, #tpu.dimension_semantics<arbitrary>], iteration_bounds = array<i64: 1, 4>, scalar_prefetch = 0 : i64, scratch_operands = 1 : i64, tpu.core_type = #tpu.core_type<tc>, window_params = [{transform_indices = @transform_0, window_bounds = array<i64: 16, 512>}, {transform_indices = @transform_1, window_bounds = array<i64: 512, 128>}, {transform_indices = @transform_2, window_bounds = array<i64: 16, 1>}]} {
    %c0_i32 = arith.constant 0 : i32
    %0 = arith.cmpi eq, %arg1, %c0_i32 : i32
    %1 = arith.extui %0 : i1 to i32
    %c0_i32_0 = arith.constant 0 : i32
    %2 = arith.cmpi ne, %1, %c0_i32_0 : i32
    scf.if %2 {
      %cst_9 = arith.constant 0.000000e+00 : f32
      %12 = vector.broadcast %cst_9 : f32 to vector<16x128xf32>
      %c0_10 = arith.constant 0 : index
      %c0_11 = arith.constant 0 : index
      %13 = vector.load %arg5[%c0_10, %c0_11] : memref<16x128xf32, #tpu.memory_space<vmem>>, vector<16x128xf32>
      tpu.vector_store %arg5[%c0_10, %c0_11], %12 {strides = array<i32>} : memref<16x128xf32, #tpu.memory_space<vmem>>, vector<16x128xf32>,
    } else {
    }
    %c0 = arith.constant 0 : index
    %c0_1 = arith.constant 0 : index
    %3 = vector.load %arg5[%c0, %c0_1] : memref<16x128xf32, #tpu.memory_space<vmem>>, vector<16x128xf32>
    %c0_2 = arith.constant 0 : index
    %c0_3 = arith.constant 0 : index
    %4 = vector.load %arg2[%c0_2, %c0_3] : memref<16x512xf32, #tpu.memory_space<vmem>>, vector<16x512xf32>
    %c0_4 = arith.constant 0 : index
    %c0_5 = arith.constant 0 : index
    %5 = vector.load %arg3[%c0_4, %c0_5] : memref<512x128xf32, #tpu.memory_space<vmem>>, vector<512x128xf32>
    %cst = arith.constant dense<0.000000e+00> : vector<16x128xf32>
    %6 = tpu.matmul %4, %5, %cst {dimension_numbers = #tpu.dot_dimension_numbers<[1], [0], [0], [1], [0, 0, 1, 1], [], []>} : vector<16x512xf32>, vector<512x128xf32>, vector<16x128xf32> -> vector<16x128xf32>
    %7 = arith.addf %3, %6 : vector<16x128xf32>
    %c0_6 = arith.constant 0 : index
    %c0_7 = arith.constant 0 : index
    %8 = vector.load %arg5[%c0_6, %c0_7] : memref<16x128xf32, #tpu.memory_space<vmem>>, vector<16x128xf32>
    tpu.vector_store %arg5[%c0_6, %c0_7], %7 {strides = array<i32>} : memref<16x128xf32, #tpu.memory_space<vmem>>, vector<16x128xf32>,
    %c3_i32 = arith.constant 3 : i32
    %9 = arith.cmpi eq, %arg1, %c3_i32 : i32
    %10 = arith.extui %9 : i1 to i32
    %c0_i32_8 = arith.constant 0 : i32
    %11 = arith.cmpi ne, %10, %c0_i32_8 : i32
    scf.if %11 {
      %c0_9 = arith.constant 0 : index
      %c0_10 = arith.constant 0 : index
      %12 = vector.load %arg5[%c0_9, %c0_10] : memref<16x128xf32, #tpu.memory_space<vmem>>, vector<16x128xf32>
      %13 = tpu.iota {dimensions = array<i32: 1>} : vector<16x128xi32>
      %c20_i32 = arith.constant 20 : i32
      %14 = vector.broadcast %c20_i32 : i32 to vector<16x128xi32>
      %15 = arith.cmpi slt, %13, %14 : vector<16x128xi32>
      %cst_11 = arith.constant 0xFF800000 : f32
      %16 = vector.broadcast %cst_11 : f32 to vector<16x128xf32>
      %17 = arith.select %15, %12, %16 : vector<16x128xi1>, vector<16x128xf32>
      %cst_12 = arith.constant dense<0xFF800000> : vector<16xf32>
      %18 = vector.multi_reduction <maximumf>, %17, %cst_12 [1] : vector<16x128xf32> to vector<16xf32>
      %19 = vector.shape_cast %18 : vector<16xf32> to vector<16x1xf32>
      %c0_13 = arith.constant 0 : index
      %c0_14 = arith.constant 0 : index
      %20 = vector.load %arg4[%c0_13, %c0_14] : memref<16x1xf32, #tpu.memory_space<vmem>>, vector<16x1xf32>
      tpu.vector_store %arg4[%c0_13, %c0_14], %19 {strides = array<i32>} : memref<16x1xf32, #tpu.memory_space<vmem>>, vector<16x1xf32>,
    } else {
    }
    return
  }
  func.func @transform_0(%arg0: i32, %arg1: i32) -> (i32, i32) {
    %c0_i32 = arith.constant 0 : i32
    return %arg0, %arg1 : i32, i32
  }
  func.func @transform_1(%arg0: i32, %arg1: i32) -> (i32, i32) {
    %c0_i32 = arith.constant 0 : i32
    %c0_i32_0 = arith.constant 0 : i32
    return %arg1, %c0_i32 : i32, i32
  }
  func.func @transform_2(%arg0: i32, %arg1: i32) -> (i32, i32) {
    %c0_i32 = arith.constant 0 : i32
    %c0_i32_0 = arith.constant 0 : i32
    return %arg0, %c0_i32 : i32, i32
  }
}

</mosaic_0001>

<llo_original>
// kernel: tpu_custom_call.1
$region0: #{tpu_custom_call.1}
  #allocation0 [shape = 'u32[]', space=smem, size = 0x4, offset = 0x4, fixed_abs, tag = 'smem constant byte address 0x4 - core index']
  #allocation1 [shape = 'u32[72,128]{1,0:T(1,128)}', space=vmem, size = 0x9000, scoped, tag = 'internal scratch']
  #allocation2 [shape = 'f32[16,128]{1,0:T(8,128)}', space=vmem, size = 0x2000, scoped, tag = 'scratch operand']
  %s0 = inlined_call_operand.hbm [shape: f32[16,2048], index: 0, kind: input, shape index: {}]
  %s1 = inlined_call_operand.hbm [shape: f32[2048,128], index: 1, kind: input, shape index: {}]
  %s2 = inlined_call_operand.vmem [shape: f32[16,1], index: 2, kind: output, shape index: {}]
  %s3 = sld [smem:[#allocation0]]
  $region57: #{tpu_custom_call.1} parent=0
    _
  %s5 = ssub.s32 1, %s3
  %s6 = scalar_select 0, %s5, %s3
  $region1: #{tpu_custom_call.1} parent=0
    #allocation3 [shape = 'u8[65536]{0}', space=vmem, size = 0x10000, scoped, tag = 'input window, operand 0']
    #allocation4 [shape = 's32[2]{0}', space=sflag, size = 0x8, scoped, tag = 'scoped memory for tpu_custom_call.1']
    #allocation5 [shape = 'u8[524288]{0}', space=vmem, size = 0x80000, scoped, tag = 'input window, operand 1']
    #allocation6 [shape = 's32[2]{0}', space=sflag, size = 0x8, scoped, tag = 'scoped memory for tpu_custom_call.1']
    %7 = vsyncpa [#allocation4], 0
    %s8 = scalar_lea.sflag [#allocation4], 1
    %9 = vsyncpa %s8, 0
    %10 = vsyncpa [#allocation6], 0
    %s11 = scalar_lea.sflag [#allocation6], 1
    %12 = vsyncpa %s11, 0
    loop: start=0, step=1, limit=6
    $region2: #{tpu_custom_call.1} parent=1 // loop_pre_header
      _
    $region3: #{tpu_custom_call.1} parent=1 // loop_header
      %s14 = sphi 0, %s18
      %p15 = scmp.ge.s32.totalorder %s14, 6
      %s21 = sphi 0, %s33
      %s22 = sphi 0, %s29
      %s23 = sphi 0, %s21
      %s24 = sphi 0, %s22
      %s25 = sphi 0, %s23
      %s26 = sphi 0, %s24
      %s38 = sphi 0, %s40
      %s41 = sphi 0, %s38
      %s42 = sphi 0, %s41
      %s58 = sphi 0, %s42
      %s64 = sphi 0, %s66
      %s67 = sphi 0, %s64
      %s68 = sphi 0, %s67
      %s84 = sphi 0, %s68
      %s90 = sphi 0, %s92
      %s93 = sphi 0, %s90
      %s94 = sphi 0, %s93
      %s110 = sphi 0, %s94
    $region4: #{tpu_custom_call.1} parent=1 // loop_header_branch
      %17 = sbr.rel (%p15) target = $region8
    $region5: #{tpu_custom_call.1} parent=1 // loop_body
      %s19 = ssub.s32 %s14, 1
      %s20 = ssub.s32 %s14, 2
      %s27 = sadd.s32 1, %s22
      %p28 = scmp.ge.s32.totalorder %s27, 4
      %s29 = scalar_select %p28, 0, %s27
      %s30 = sadd.s32 1, %s21
      %s31 = scalar_select %p28, %s30, %s21
      %p32 = scmp.ge.s32.totalorder %s31, 1
      %s33 = scalar_select %p32, 0, %s31
      %s34 = ssub.s32 %s21, %s33
      %s35 = ssub.s32 %s22, %s29
      %s36 = sor.u32 %s34, %s35
      %p37 = scmp.eq.s32.totalorder %s36, 0
      %s39 = sadd.s32 %s38, 1
      %s40 = scalar_select %p37, %s38, %s39
      %p43 = pneg %p37
      %p44 = scmp.eq.s32.totalorder %s14, 3
      %p45 = por %p43, %p44
      %p46 = scmp.ne.s32.totalorder %s38, %s41
      %p47 = scmp.eq.s32.totalorder %s14, 0
      %p48 = por %p46, %p47
      %p49 = scmp.ne.s32.totalorder %s38, %s41
      %p50 = scmp.eq.s32.totalorder %s19, 3
      %p51 = por %p49, %p50
      %p52 = scmp.ne.s32.totalorder %s41, %s42
      %p53 = scmp.eq.s32.totalorder %s19, 0
      %p54 = por %p52, %p53
      %p55 = scmp.ne.s32.totalorder %s41, %s42
      %p56 = scmp.eq.s32.totalorder %s20, 3
      %p57 = por %p55, %p56
      %p59 = scmp.ne.s32.totalorder %s42, %s58
      %p60 = scmp.eq.s32.totalorder %s20, 0
      %p61 = por %p59, %p60
      %s62 = ssub.s32 %s22, %s29
      %p63 = scmp.eq.s32.totalorder %s62, 0
      %s65 = sadd.s32 %s64, 1
      %s66 = scalar_select %p63, %s64, %s65
      %p69 = pneg %p63
      %p70 = scmp.eq.s32.totalorder %s14, 3
      %p71 = por %p69, %p70
      %p72 = scmp.ne.s32.totalorder %s64, %s67
      %p73 = scmp.eq.s32.totalorder %s14, 0
      %p74 = por %p72, %p73
      %p75 = scmp.ne.s32.totalorder %s64, %s67
      %p76 = scmp.eq.s32.totalorder %s19, 3
      %p77 = por %p75, %p76
      %p78 = scmp.ne.s32.totalorder %s67, %s68
      %p79 = scmp.eq.s32.totalorder %s19, 0
      %p80 = por %p78, %p79
      %p81 = scmp.ne.s32.totalorder %s67, %s68
      %p82 = scmp.eq.s32.totalorder %s20, 3
      %p83 = por %p81, %p82
      %p85 = scmp.ne.s32.totalorder %s68, %s84
      %p86 = scmp.eq.s32.totalorder %s20, 0
      %p87 = por %p85, %p86
      %s88 = ssub.s32 %s21, %s33
      %p89 = scmp.eq.s32.totalorder %s88, 0
      %s91 = sadd.s32 %s90, 1
      %s92 = scalar_select %p89, %s90, %s91
      %p95 = pneg %p89
      %p96 = scmp.eq.s32.totalorder %s14, 3
      %p97 = por %p95, %p96
      %p98 = scmp.ne.s32.totalorder %s90, %s93
      %p99 = scmp.eq.s32.totalorder %s14, 0
      %p100 = por %p98, %p99
      %p101 = scmp.ne.s32.totalorder %s90, %s93
      %p102 = scmp.eq.s32.totalorder %s19, 3
      %p103 = por %p101, %p102
      %p104 = scmp.ne.s32.totalorder %s93, %s94
      %p105 = scmp.eq.s32.totalorder %s19, 0
      %p106 = por %p104, %p105
      %p107 = scmp.ne.s32.totalorder %s93, %s94
      %p108 = scmp.eq.s32.totalorder %s20, 3
      %p109 = por %p107, %p108
      %p111 = scmp.ne.s32.totalorder %s94, %s110
      %p112 = scmp.eq.s32.totalorder %s20, 0
      %p113 = por %p111, %p112
      %p114 = scmp.le.s32.totalorder 1, %s14
      %p115 = scmp.lt.s32.totalorder %s14, 5
      %p116 = pnand %p114, %p115
      %p117 = pneg %p116
      // Predicated region
      $region9: #{tpu_custom_call.1} parent=5 // pred_check
        _
      $region10: #{tpu_custom_call.1} parent=5 // pred_check_branch
        %119 = sbr.rel (%p116) target = $region12
      $region11: #{tpu_custom_call.1} parent=5 // pred_region
        %s120 = ssub.s32 %s14, 1
      $region12: #{tpu_custom_call.1} parent=5 // pred_fallthru
        _
      %p121 = scmp.lt.s32.totalorder %s14, 4
      // Predicated region
      $region13: #{tpu_custom_call.1} parent=5 // pred_check
        %p122 = pneg %p121
      $region14: #{tpu_custom_call.1} parent=5 // pred_check_branch
        %124 = sbr.rel (%p122) target = $region16
      $region15: #{tpu_custom_call.1} parent=5 // pred_region
        // Predicated region
        $region17: #{tpu_custom_call.1} parent=15 // pred_check
          %p125 = pneg %p48
        $region18: #{tpu_custom_call.1} parent=15 // pred_check_branch
          %127 = sbr.rel (%p125) target = $region20
        $region19: #{tpu_custom_call.1} parent=15 // pred_region
          %s128 = sand.u32 %s38, 1
          %s129 = scalar_lea.sflag [#allocation4], %s128
          %s130 = sand.u32 %s38, 1
          %s131 = smul.addr %s130, 64
          %s132 = scalar_lea.vmem [#allocation3], %s131
          %s133 = smul.u32 2, %s21
          %s134 = smul.u32 4, %s22
          %136 = vsyncadd %s129, 0
          %s137 = smul.addr %s133, 16
          %s138 = sadd.s32 %s134, %s137
          %s139 = smul.addr %s138, 8
          %s140 = scalar_lea.hbm %s0, %s139
          %s141 = sshll.u32 %s140, 4
          %s142 = int_to_ptr.hbm [resolvable:$true] %s141
          %s143 = sshll.u32 %s132, 4
          %s144 = int_to_ptr.vmem [resolvable:$true] %s143
          %149 = dma.hbm_to_vmem [thread:$0]  %s142, 1024, %s144, %s129, 2048, 512, 32
        $region20: #{tpu_custom_call.1} parent=15 // pred_fallthru
          _
        // Predicated region
        $region21: #{tpu_custom_call.1} parent=15 // pred_check
          %p150 = pneg %p74
        $region22: #{tpu_custom_call.1} parent=15 // pred_check_branch
          %152 = sbr.rel (%p150) target = $region24
        $region23: #{tpu_custom_call.1} parent=15 // pred_region
          %s153 = sand.u32 %s64, 1
          %s154 = scalar_lea.sflag [#allocation6], %s153
          %s155 = sand.u32 %s64, 1
          %s156 = smul.addr %s155, 512
          %s157 = scalar_lea.vmem [#allocation5], %s156
          %s158 = smul.u32 64, %s22
          %160 = vsyncadd %s154, 0
          %s161 = smul.addr %s158, 8
          %s162 = scalar_lea.hbm %s1, %s161
          %s163 = sshll.u32 %s162, 4
          %s164 = int_to_ptr.hbm [resolvable:$true] %s163
          %s165 = sshll.u32 %s157, 4
          %s166 = int_to_ptr.vmem [resolvable:$true] %s165
          %171 = dma.hbm_to_vmem [thread:$0]  %s164, 8192, %s166, %s154, 128, 128, 8
        $region24: #{tpu_custom_call.1} parent=15 // pred_fallthru
          _
      $region16: #{tpu_custom_call.1} parent=5 // pred_fallthru
        _
      %p172 = scmp.le.s32.totalorder 1, %s14
      %p173 = scmp.lt.s32.totalorder %s14, 5
      %p174 = pnand %p172, %p173
      %p175 = pneg %p174
      // Predicated region
      $region25: #{tpu_custom_call.1} parent=5 // pred_check
        _
      $region26: #{tpu_custom_call.1} parent=5 // pred_check_branch
        %177 = sbr.rel (%p174) target = $region28
      $region27: #{tpu_custom_call.1} parent=5 // pred_region
        %s178 = ssub.s32 %s14, 1
        %s179 = sand.u32 %s41, 1
        %s180 = scalar_lea.sflag [#allocation4], %s179
        %s181 = sand.u32 %s41, 1
        %s182 = smul.addr %s181, 64
        %s183 = scalar_lea.vmem [#allocation3], %s182
        // Predicated region
        $region29: #{tpu_custom_call.1} parent=27 // pred_check
          %p184 = pneg %p54
        $region30: #{tpu_custom_call.1} parent=27 // pred_check_branch
          %186 = sbr.rel (%p184) target = $region32
        $region31: #{tpu_custom_call.1} parent=27 // pred_region
          %188 = dma.done %s180, 1024
        $region32: #{tpu_custom_call.1} parent=27 // pred_fallthru
          _
        %s189 = sand.u32 %s67, 1
        %s190 = scalar_lea.sflag [#allocation6], %s189
        %s191 = sand.u32 %s67, 1
        %s192 = smul.addr %s191, 512
        %s193 = scalar_lea.vmem [#allocation5], %s192
        // Predicated region
        $region33: #{tpu_custom_call.1} parent=27 // pred_check
          %p194 = pneg %p80
        $region34: #{tpu_custom_call.1} parent=27 // pred_check_branch
          %196 = sbr.rel (%p194) target = $region36
        $region35: #{tpu_custom_call.1} parent=27 // pred_region
          %198 = dma.done %s190, 8192
        $region36: #{tpu_custom_call.1} parent=27 // pred_fallthru
          _
        %s199 = sand.u32 %s41, 1
        %s200 = scalar_lea.sflag [#allocation4], %s199
        %s201 = sand.u32 %s41, 1
        %s202 = smul.addr %s201, 64
        %s203 = scalar_lea.vmem [#allocation3], %s202
        %p204 = pneg %p54
        %p205 = pneg %p51
        %s206 = sand.u32 %s67, 1
        %s207 = scalar_lea.sflag [#allocation6], %s206
        %s208 = sand.u32 %s67, 1
        %s209 = smul.addr %s208, 512
        %s210 = scalar_lea.vmem [#allocation5], %s209
        %p211 = pneg %p80
        %p212 = pneg %p77
        %p213 = pneg %p106
        %p214 = pneg %p103
        %s215 = smul.u32 2, %s23
        %p216 = scmp.lt.s32.totalorder %s215, 1
        %s217 = scalar_select %p216, %s215, 1
        %s218 = smul.addr %s217, 8
        %s219 = scalar_lea.vmem %s2, %s218
        %s220 = smul.u32 2, %s23
        %s221 = smul.u32 4, %s24
        %s222 = smul.u32 64, %s24
        %s223 = smul.u32 2, %s23
        %p224 = scmp.lt.s32.totalorder %s223, 1
        %s225 = scalar_select %p224, %s223, 1
        %s226 = smul.addr %s225, 8
        %s227 = scalar_lea.vmem %s2, %s226
        %s228 = smul.u32 2, %s23
        %p229 = scmp.eq.s32.totalorder %s24, 0
        // Predicated region
        $region37: #{tpu_custom_call.1} parent=27 // pred_check
          %p230 = pneg %p229
        $region38: #{tpu_custom_call.1} parent=27 // pred_check_branch
          %232 = sbr.rel (%p230) target = $region40
        $region39: #{tpu_custom_call.1} parent=27 // pred_region
          %233 = vst [vmem:[#allocation2] sm:$0xff] 0.0
          %234 = vst [vmem:[#allocation2 + $0x8] sm:$0xff] 0.0
        $region40: #{tpu_custom_call.1} parent=27 // pred_fallthru
          _
        %v235 = vld [vmem:[#allocation2] sm:$0xff]
        %v236 = vld [vmem:[#allocation2 + $0x8] sm:$0xff]
        %v237 = vld [vmem:[%s183] sm:$0xff]
        %v238 = vld [vmem:[%s183 + $0x8] sm:$0xff]
        %v239 = vld [vmem:[%s183 + $0x10] sm:$0xff]
        %v240 = vld [vmem:[%s183 + $0x18] sm:$0xff]
        %v241 = vld [vmem:[%s183 + $0x20] sm:$0xff]
        %v242 = vld [vmem:[%s183 + $0x28] sm:$0xff]
        %v243 = vld [vmem:[%s183 + $0x30] sm:$0xff]
        %v244 = vld [vmem:[%s183 + $0x38] sm:$0xff]
        %v245 = vld [vmem:[%s193] sm:$0xff]
        %v246 = vld [vmem:[%s193 + $0x8] sm:$0xff]
        %v247 = vld [vmem:[%s193 + $0x10] sm:$0xff]
        %v248 = vld [vmem:[%s193 + $0x18] sm:$0xff]
        %v249 = vld [vmem:[%s193 + $0x20] sm:$0xff]
        %v250 = vld [vmem:[%s193 + $0x28] sm:$0xff]
        %v251 = vld [vmem:[%s193 + $0x30] sm:$0xff]
        %v252 = vld [vmem:[%s193 + $0x38] sm:$0xff]
        %v253 = vld [vmem:[%s193 + $0x40] sm:$0xff]
        %v254 = vld [vmem:[%s193 + $0x48] sm:$0xff]
        %v255 = vld [vmem:[%s193 + $0x50] sm:$0xff]
        %v256 = vld [vmem:[%s193 + $0x58] sm:$0xff]
        %v257 = vld [vmem:[%s193 + $0x60] sm:$0xff]
        %v258 = vld [vmem:[%s193 + $0x68] sm:$0xff]
        %v259 = vld [vmem:[%s193 + $0x70] sm:$0xff]
        %v260 = vld [vmem:[%s193 + $0x78] sm:$0xff]
        %v261 = vld [vmem:[%s193 + $0x80] sm:$0xff]
        %v262 = vld [vmem:[%s193 + $0x88] sm:$0xff]
        %v263 = vld [vmem:[%s193 + $0x90] sm:$0xff]
        %v264 = vld [vmem:[%s193 + $0x98] sm:$0xff]
        %v265 = vld [vmem:[%s193 + $0xa0] sm:$0xff]
        %v266 = vld [vmem:[%s193 + $0xa8] sm:$0xff]
        %v267 = vld [vmem:[%s193 + $0xb0] sm:$0xff]
        %v268 = vld [vmem:[%s193 + $0xb8] sm:$0xff]
        %v269 = vld [vmem:[%s193 + $0xc0] sm:$0xff]
        %v270 = vld [vmem:[%s193 + $0xc8] sm:$0xff]
        %v271 = vld [vmem:[%s193 + $0xd0] sm:$0xff]
        %v272 = vld [vmem:[%s193 + $0xd8] sm:$0xff]
        %v273 = vld [vmem:[%s193 + $0xe0] sm:$0xff]
        %v274 = vld [vmem:[%s193 + $0xe8] sm:$0xff]
        %v275 = vld [vmem:[%s193 + $0xf0] sm:$0xff]
        %v276 = vld [vmem:[%s193 + $0xf8] sm:$0xff]
        %v277 = vld [vmem:[%s193 + $0x100] sm:$0xff]
        %v278 = vld [vmem:[%s193 + $0x108] sm:$0xff]
        %v279 = vld [vmem:[%s193 + $0x110] sm:$0xff]
        %v280 = vld [vmem:[%s193 + $0x118] sm:$0xff]
        %v281 = vld [vmem:[%s193 + $0x120] sm:$0xff]
        %v282 = vld [vmem:[%s193 + $0x128] sm:$0xff]
        %v283 = vld [vmem:[%s193 + $0x130] sm:$0xff]
        %v284 = vld [vmem:[%s193 + $0x138] sm:$0xff]
        %v285 = vld [vmem:[%s193 + $0x140] sm:$0xff]
        %v286 = vld [vmem:[%s193 + $0x148] sm:$0xff]
        %v287 = vld [vmem:[%s193 + $0x150] sm:$0xff]
        %v288 = vld [vmem:[%s193 + $0x158] sm:$0xff]
        %v289 = vld [vmem:[%s193 + $0x160] sm:$0xff]
        %v290 = vld [vmem:[%s193 + $0x168] sm:$0xff]
        %v291 = vld [vmem:[%s193 + $0x170] sm:$0xff]
        %v292 = vld [vmem:[%s193 + $0x178] sm:$0xff]
        %v293 = vld [vmem:[%s193 + $0x180] sm:$0xff]
        %v294 = vld [vmem:[%s193 + $0x188] sm:$0xff]
        %v295 = vld [vmem:[%s193 + $0x190] sm:$0xff]
        %v296 = vld [vmem:[%s193 + $0x198] sm:$0xff]
        %v297 = vld [vmem:[%s193 + $0x1a0] sm:$0xff]
        %v298 = vld [vmem:[%s193 + $0x1a8] sm:$0xff]
        %v299 = vld [vmem:[%s193 + $0x1b0] sm:$0xff]
        %v300 = vld [vmem:[%s193 + $0x1b8] sm:$0xff]
        %v301 = vld [vmem:[%s193 + $0x1c0] sm:$0xff]
        %v302 = vld [vmem:[%s193 + $0x1c8] sm:$0xff]
        %v303 = vld [vmem:[%s193 + $0x1d0] sm:$0xff]
        %v304 = vld [vmem:[%s193 + $0x1d8] sm:$0xff]
        %v305 = vld [vmem:[%s193 + $0x1e0] sm:$0xff]
        %v306 = vld [vmem:[%s193 + $0x1e8] sm:$0xff]
        %v307 = vld [vmem:[%s193 + $0x1f0] sm:$0xff]
        %v308 = vld [vmem:[%s193 + $0x1f8] sm:$0xff]
        %309 = vmatpush.msra.mxu0 %v260
        %310 = vmatpush.msra.mxu0 %v259
        %311 = vmatpush.msra.mxu0 %v258
        %312 = vmatpush.msra.mxu0 %v257
        %313 = vmatpush.msra.mxu0 %v256
        %314 = vmatpush.msra.mxu0 %v255
        %315 = vmatpush.msra.mxu0 %v254
        %316 = vmatpush.msra.mxu0 %v253
        %317 = vmatpush.msra.mxu0 %v252
        %318 = vmatpush.msra.mxu0 %v251
        %319 = vmatpush.msra.mxu0 %v250
        %320 = vmatpush.msra.mxu0 %v249
        %321 = vmatpush.msra.mxu0 %v248
        %322 = vmatpush.msra.mxu0 %v247
        %323 = vmatpush.msra.mxu0 %v246
        %324 = vmatpush.msra.mxu0 %v245
        %325 = vmatmul.f32.gmra.mxu0 %v237
        %v326 = vpop.f32.mrf.mxu0
        %v327 = vadd.f32 0.0, %v326
        %328 = vmatmul.f32.gmra.mxu0 %v241
        %v329 = vpop.f32.mrf.mxu0
        %v330 = vadd.f32 0.0, %v329
        %331 = vdwg.mxu0
        %332 = vmatpush.msra.mxu0 %v276
        %333 = vmatpush.msra.mxu0 %v275
        %334 = vmatpush.msra.mxu0 %v274
        %335 = vmatpush.msra.mxu0 %v273
        %336 = vmatpush.msra.mxu0 %v272
        %337 = vmatpush.msra.mxu0 %v271
        %338 = vmatpush.msra.mxu0 %v270
        %339 = vmatpush.msra.mxu0 %v269
        %340 = vmatpush.msra.mxu0 %v268
        %341 = vmatpush.msra.mxu0 %v267
        %342 = vmatpush.msra.mxu0 %v266
        %343 = vmatpush.msra.mxu0 %v265
        %344 = vmatpush.msra.mxu0 %v264
        %345 = vmatpush.msra.mxu0 %v263
        %346 = vmatpush.msra.mxu0 %v262
        %347 = vmatpush.msra.mxu0 %v261
        %348 = vmatmul.f32.gmra.mxu0 %v238
        %v349 = vpop.f32.mrf.mxu0
        %v350 = vadd.f32 %v327, %v349
        %351 = vmatmul.f32.gmra.mxu0 %v242
        %v352 = vpop.f32.mrf.mxu0
        %v353 = vadd.f32 %v330, %v352
        %354 = vdwg.mxu0
        %355 = vmatpush.msra.mxu0 %v292
        %356 = vmatpush.msra.mxu0 %v291
        %357 = vmatpush.msra.mxu0 %v290
        %358 = vmatpush.msra.mxu0 %v289
        %359 = vmatpush.msra.mxu0 %v288
        %360 = vmatpush.msra.mxu0 %v287
        %361 = vmatpush.msra.mxu0 %v286
        %362 = vmatpush.msra.mxu0 %v285
        %363 = vmatpush.msra.mxu0 %v284
        %364 = vmatpush.msra.mxu0 %v283
        %365 = vmatpush.msra.mxu0 %v282
        %366 = vmatpush.msra.mxu0 %v281
        %367 = vmatpush.msra.mxu0 %v280
        %368 = vmatpush.msra.mxu0 %v279
        %369 = vmatpush.msra.mxu0 %v278
        %370 = vmatpush.msra.mxu0 %v277
        %371 = vmatmul.f32.gmra.mxu0 %v239
        %v372 = vpop.f32.mrf.mxu0
        %v373 = vadd.f32 %v350, %v372
        %374 = vmatmul.f32.gmra.mxu0 %v243
        %v375 = vpop.f32.mrf.mxu0
        %v376 = vadd.f32 %v353, %v375
        %377 = vdwg.mxu0
        %378 = vmatpush.msra.mxu0 %v308
        %379 = vmatpush.msra.mxu0 %v307
        %380 = vmatpush.msra.mxu0 %v306
        %381 = vmatpush.msra.mxu0 %v305
        %382 = vmatpush.msra.mxu0 %v304
        %383 = vmatpush.msra.mxu0 %v303
        %384 = vmatpush.msra.mxu0 %v302
        %385 = vmatpush.msra.mxu0 %v301
        %386 = vmatpush.msra.mxu0 %v300
        %387 = vmatpush.msra.mxu0 %v299
        %388 = vmatpush.msra.mxu0 %v298
        %389 = vmatpush.msra.mxu0 %v297
        %390 = vmatpush.msra.mxu0 %v296
        %391 = vmatpush.msra.mxu0 %v295
        %392 = vmatpush.msra.mxu0 %v294
        %393 = vmatpush.msra.mxu0 %v293
        %394 = vmatmul.f32.gmra.mxu0 %v240
        %v395 = vpop.f32.mrf.mxu0
        %v396 = vadd.f32 %v373, %v395
        %397 = vmatmul.f32.gmra.mxu0 %v244
        %v398 = vpop.f32.mrf.mxu0
        %v399 = vadd.f32 %v376, %v398
        %400 = vdwg.mxu0
        %v401 = vadd.f32 %v235, %v396
        %v402 = vadd.f32 %v236, %v399
        %403 = vst [vmem:[#allocation2] sm:$0xff] %v401
        %404 = vst [vmem:[#allocation2 + $0x8] sm:$0xff] %v402
        %p405 = scmp.eq.s32.totalorder %s24, 3
        // Predicated region
        $region41: #{tpu_custom_call.1} parent=27 // pred_check
          %p406 = pneg %p405
        $region42: #{tpu_custom_call.1} parent=27 // pred_check_branch
          %408 = sbr.rel (%p406) target = $region44
        $region43: #{tpu_custom_call.1} parent=27 // pred_region
          %v409 = vld [vmem:[#allocation2] sm:$0xff]
          %v410 = vld [vmem:[#allocation2 + $0x8] sm:$0xff]
          %v411 = vlaneseq
          %v412 = vand.u32 %v411, 127
          %vm413 = vcmp.lt.s32.totalorder %v412, 20
          %v414 = vsel %vm413, %v409, -inf
          %v415 = vsel %vm413, %v410, -inf
          %416 = vmax.xlane.f32.xlu0 %v414
          %v417 = vpop.xlane.xlu0 %416
          %418 = vmax.xlane.f32.xlu0 %v415
          %v419 = vpop.xlane.xlu0 %418
          %vm420 = vcmask 7168
          %421 = vst.msk [vmem:[%s227] sm:$0xff] %vm420, %v417
          %422 = vst.msk [vmem:[%s227 + $0x8] sm:$0xff] %vm420, %v419
        $region44: #{tpu_custom_call.1} parent=27 // pred_fallthru
          _
        %s423 = smul.u32 2, %s23
        %p424 = scmp.lt.s32.totalorder %s423, 1
        %s425 = scalar_select %p424, %s423, 1
        %s426 = smul.addr %s425, 8
        %s427 = scalar_lea.vmem %s2, %s426
        // Predicated region
        $region45: #{tpu_custom_call.1} parent=27 // pred_check
          %p428 = pneg %p103
        $region46: #{tpu_custom_call.1} parent=27 // pred_check_branch
          %430 = sbr.rel (%p428) target = $region48
        $region47: #{tpu_custom_call.1} parent=27 // pred_region
          %s431 = smul.u32 2, %s23
        $region48: #{tpu_custom_call.1} parent=27 // pred_fallthru
          _
        // Predicated region
        $region49: #{tpu_custom_call.1} parent=27 // pred_check
          %p432 = pneg %p103
        $region50: #{tpu_custom_call.1} parent=27 // pred_check_branch
          %434 = sbr.rel (%p432) target = $region52
        $region51: #{tpu_custom_call.1} parent=27 // pred_region
          %s435 = smul.u32 2, %s23
          %p436 = scmp.lt.s32.totalorder %s435, 1
          %s437 = scalar_select %p436, %s435, 1
          %s438 = smul.addr %s437, 8
          %s439 = scalar_lea.vmem %s2, %s438
        $region52: #{tpu_custom_call.1} parent=27 // pred_fallthru
          _
      $region28: #{tpu_custom_call.1} parent=5 // pred_fallthru
        _
      %p440 = scmp.le.s32.totalorder 2, %s14
      // Predicated region
      $region53: #{tpu_custom_call.1} parent=5 // pred_check
        %p441 = pneg %p440
      $region54: #{tpu_custom_call.1} parent=5 // pred_check_branch
        %443 = sbr.rel (%p441) target = $region56
      $region55: #{tpu_custom_call.1} parent=5 // pred_region
        %s444 = ssub.s32 %s14, 2
      $region56: #{tpu_custom_call.1} parent=5 // pred_fallthru
        _
    $region6: #{tpu_custom_call.1} parent=1 // loop_footer
      %s18 = sadd.s32 1, %s14
    $region7: #{tpu_custom_call.1} parent=1 // loop_footer_branch
      %13 = sbr.rel target = $region3
    $region8: #{tpu_custom_call.1} parent=1 // loop_exit
      _
    %445 = vsyncpa [#allocation4], 1
    %s446 = scalar_lea.sflag [#allocation4], 1
    %447 = vsyncpa %s446, 1
    %448 = vsyncpa [#allocation6], 1
    %s449 = scalar_lea.sflag [#allocation6], 1
    %450 = vsyncpa %s449, 1

</llo_original>
